<compile_context>
chip_gen: v7x
topology: tpu7x:2x2x1
jax: 0.10.0
libtpu: 0.0.40
codegen_flags: <defaults>
</compile_context>

<pallas_src>
import jax
import jax.numpy as jnp
from jax import lax
from jax.experimental import pallas as pl
from jax.experimental.pallas import tpu as pltpu


def _make_kernel(beta: float, loss_f: str):
    half_over_beta = 0.5 / float(beta)   # strength-reduced: no per-element divide
    half_beta = 0.5 * float(beta)

    def kernel(pred_ref, gt_ref, red_ref, green_ref):
        g = pl.program_id(2)

        @pl.when(g == 0)
        def _():
            red_ref[...] = jnp.zeros_like(red_ref)
            green_ref[...] = jnp.zeros_like(green_ref)

        # Interleaved tiles: even lanes = red channel, odd lanes = green channel.
        p = pred_ref[...].astype(jnp.float32)   # (TB, TL)
        t = gt_ref[...].astype(jnp.float32)     # (TB, TL)
        diff = t - p
        if loss_f == "smooth":
            ad = jnp.abs(diff)
            elem = jnp.where(ad < beta, half_over_beta * diff * diff, ad - half_beta)
        else:  # 'mse'
            elem = diff * diff

        lane = lax.broadcasted_iota(jnp.int32, elem.shape, 1)
        is_red = (lane & 1) == 0
        total = jnp.sum(elem, axis=1, keepdims=True)                            # (TB, 1)
        red = jnp.sum(jnp.where(is_red, elem, 0.0), axis=1, keepdims=True)      # (TB, 1)
        green = total - red                                                     # (TB, 1)

        red_ref[...] += red[None]      # (1, TB, 1) resident accumulator
        green_ref[...] += green[None]

    return kernel


def _choose_tiling(B: int, N2: int):
    # Row (sublane) tiling over batch.
    if B <= 8:
        Bp, TB = B, B
    else:
        TB = 8
        Bp = ((B + 7) // 8) * 8
    # Lane tiling over the interleaved 2*N axis; reduction tiles are split into
    # P "parallel" chunks (v7x megacore) of G tiles each.
    MAX_SINGLE = 8192
    if N2 <= MAX_SINGLE:
        TL, P, G, N2p = N2, 1, 1, N2
    else:
        TL = 4096
        n_tiles = -(-N2 // TL)
        P = 2 if n_tiles >= 2 else 1
        G = -(-n_tiles // P)
        N2p = P * G * TL
    return Bp, TB, N2p, TL, P, G


def r_lossv2_pallas(pred_r, gt_red, gt_green, sym, *, weight=1.0, beta=0.001, loss_f="smooth"):
    """JAX/Pallas equivalent of r_lossv2.forward (single-host; world_size == 1)."""
    if loss_f not in ("smooth", "mse"):
        raise ValueError(f"unknown loss_f: {loss_f}")
    B, N, C = pred_r.shape
    assert C == 2, "pred_r must have 2 channels (red, green)"
    N2 = 2 * N

    # Free reshape to interleaved lanes; one contiguous concat puts gt in the same layout.
    pred2 = pred_r.reshape(B, N2)
    gt2 = jnp.concatenate([gt_red, gt_green], axis=2).reshape(B, N2)

    Bp, TB, N2p, TL, P, G = _choose_tiling(B, N2)
    if (Bp, N2p) != (B, N2):
        pred2 = jnp.pad(pred2, ((0, Bp - B), (0, N2p - N2)))   # zero pad -> loss(0) == 0
        gt2 = jnp.pad(gt2, ((0, Bp - B), (0, N2p - N2)))

    grid = (Bp // TB, P, G)
    in_spec = pl.BlockSpec((TB, TL), lambda ib, p, g: (ib, p * G + g))
    out_spec = pl.BlockSpec((1, TB, 1), lambda ib, p, g: (p, ib, 0))
    out_shape = (jax.ShapeDtypeStruct((P, Bp, 1), jnp.float32),
                 jax.ShapeDtypeStruct((P, Bp, 1), jnp.float32))

    bytes_in = pred2.size * pred2.dtype.itemsize + gt2.size * gt2.dtype.itemsize
    cost = pl.CostEstimate(flops=10 * Bp * N2p, transcendentals=0,
                           bytes_accessed=int(bytes_in + 2 * P * Bp * 4))

    red_part, green_part = pl.pallas_call(
        _make_kernel(float(beta), loss_f),
        grid=grid,
        in_specs=[in_spec, in_spec],
        out_specs=(out_spec, out_spec),
        out_shape=out_shape,
        compiler_params=pltpu.CompilerParams(
            dimension_semantics=("parallel", "parallel", "arbitrary")),
        cost_estimate=cost,
    )(pred2, gt2)

    # ---- tiny O(B) epilogue in plain JAX: finalize sums, apply mask / divisions ----
    red_sums = jnp.sum(red_part, axis=0)[:B, 0]      # (B,) sum over N of red elem loss
    green_sums = jnp.sum(green_part, axis=0)[:B, 0]  # (B,)
    green_loss = jnp.sum(green_sums) / (B * N)

    mask = sym[:, 0] == 1
    valid = B - jnp.sum(mask.astype(jnp.float32))
    red_per = jnp.where(mask, 0.0, red_sums / N)
    denom = jnp.where(valid > 0.0, valid, 1.0)
    red_loss = jnp.where(valid > 0.0, jnp.sum(red_per) / denom, 0.0)

    # TODO(synk): distributed all_reduce of `valid` (world_size > 1) has no single-chip
    # Pallas equivalent here; single-host semantics (world_size == 1) are implemented.
    return weight * (green_loss + red_loss)


def r_lossv2_ref(pred_r, gt_red, gt_green, sym, *, weight=1.0, beta=0.001, loss_f="smooth"):
    """Pure-JAX reference mirroring the PyTorch forward (for correctness check)."""
    pred_r = pred_r.astype(jnp.float32)
    pred_green = pred_r[:, :, 1:2]
    pred_red = pred_r[:, :, 0:1]

    def smooth_l1(a, b):
        d = a - b
        ad = jnp.abs(d)
        return jnp.where(ad < beta, 0.5 * d * d / beta, ad - 0.5 * beta)

    if loss_f == "smooth":
        green_loss = jnp.mean(smooth_l1(gt_green.astype(jnp.float32), pred_green))
        red_elem = smooth_l1(gt_red.astype(jnp.float32), pred_red)[:, :, 0]
    else:
        green_loss = jnp.mean((gt_green.astype(jnp.float32) - pred_green) ** 2)
        red_elem = ((gt_red.astype(jnp.float32) - pred_red) ** 2)[:, :, 0]

    mask = sym[:, 0] == 1
    B = mask.shape[0]
    valid = B - jnp.sum(mask.astype(jnp.float32))
    red_per = jnp.mean(red_elem, axis=-1)
    red_per = jnp.where(mask, 0.0, red_per)
    red_loss = jnp.where(valid > 0.0, jnp.sum(red_per) / jnp.where(valid > 0.0, valid, 1.0), 0.0)
    return weight * (green_loss + red_loss)


if __name__ == "__main__":
    key = jax.random.PRNGKey(0)
    k1, k2, k3, k4, k5, k6 = jax.random.split(key, 6)

    # ---- Test 1: small shapes, smooth-L1, one symmetric sample ----
    B, N = 2, 8
    pred_r = jax.random.normal(k1, (B, N, 2), dtype=jnp.float32) * 0.05
    gt_red = jax.random.normal(k2, (B, N, 1), dtype=jnp.float32) * 0.05
    gt_green = jax.random.normal(k3, (B, N, 1), dtype=jnp.float32) * 0.05
    sym = jnp.array([[1.0, 0.0, 0.0],
                     [0.0, 0.0, 0.0]], dtype=jnp.float32)

    out = r_lossv2_pallas(pred_r, gt_red, gt_green, sym, weight=1.0, beta=0.001, loss_f="smooth")
    out = jax.block_until_ready(out)
    ref = r_lossv2_ref(pred_r, gt_red, gt_green, sym, weight=1.0, beta=0.001, loss_f="smooth")
    assert jnp.allclose(out, ref, rtol=1e-5, atol=1e-6), (out, ref)

    # ---- Test 2: ragged shapes (row padding + row tiling), MSE, weight != 1 ----
    B2, N2_ = 12, 100
    pred_r2 = jax.random.normal(k4, (B2, N2_, 2), dtype=jnp.float32) * 0.1
    gt_red2 = jax.random.normal(k5, (B2, N2_, 1), dtype=jnp.float32) * 0.1
    gt_green2 = jax.random.normal(k6, (B2, N2_, 1), dtype=jnp.float32) * 0.1
    sym2 = jnp.zeros((B2, 3), dtype=jnp.float32).at[0, 0].set(1.0).at[5, 0].set(1.0)

    out2 = r_lossv2_pallas(pred_r2, gt_red2, gt_green2, sym2, weight=2.0, beta=0.001, loss_f="mse")
    out2 = jax.block_until_ready(out2)
    ref2 = r_lossv2_ref(pred_r2, gt_red2, gt_green2, sym2, weight=2.0, beta=0.001, loss_f="mse")
    assert jnp.allclose(out2, ref2, rtol=1e-5, atol=1e-6), (out2, ref2)

    # ---- Test 3: all samples symmetric (valid == 0 branch) ----
    sym_all = jnp.ones((B, 3), dtype=jnp.float32)
    out3 = r_lossv2_pallas(pred_r, gt_red, gt_green, sym_all, weight=1.0, beta=0.001, loss_f="smooth")
    out3 = jax.block_until_ready(out3)
    ref3 = r_lossv2_ref(pred_r, gt_red, gt_green, sym_all, weight=1.0, beta=0.001, loss_f="smooth")
    assert jnp.allclose(out3, ref3, rtol=1e-5, atol=1e-6), (out3, ref3)

    print("KERNEL_OK")
</pallas_src>

<mosaic_0001>
module attributes {stable_mosaic.version = 11 : i64} {
  func.func @kernel(%arg0: i32, %arg1: i32, %arg2: i32, %arg3: memref<2x16xf32, #tpu.memory_space<vmem>>, %arg4: memref<2x16xf32, #tpu.memory_space<vmem>>, %arg5: memref<1x2x1xf32, #tpu.memory_space<vmem>>, %arg6: memref<1x2x1xf32, #tpu.memory_space<vmem>>) attributes {dimension_semantics = [#tpu.dimension_semantics<parallel>, #tpu.dimension_semantics<parallel>, #tpu.dimension_semantics<arbitrary>], iteration_bounds = array<i64: 1, 1, 1>, scalar_prefetch = 0 : i64, scratch_operands = 0 : i64, tpu.core_type = #tpu.core_type<tc>, window_params = [{transform_indices = @transform_0, window_bounds = array<i64: 2, 16>}, {transform_indices = @transform_1, window_bounds = array<i64: 2, 16>}, {transform_indices = @transform_2, window_bounds = array<i64: 1, 2, 1>}, {transform_indices = @transform_3, window_bounds = array<i64: 1, 2, 1>}]} {
    %c0_i32 = arith.constant 0 : i32
    %0 = arith.cmpi eq, %arg2, %c0_i32 : i32
    %1 = arith.extui %0 : i1 to i32
    %c0_i32_0 = arith.constant 0 : i32
    %2 = arith.cmpi ne, %1, %c0_i32_0 : i32
    scf.if %2 {
      %cst_22 = arith.constant 0.000000e+00 : f32
      %35 = vector.broadcast %cst_22 : f32 to vector<1x2x1xf32>
      %c0_23 = arith.constant 0 : index
      %c0_24 = arith.constant 0 : index
      %c0_25 = arith.constant 0 : index
      %36 = vector.load %arg5[%c0_23, %c0_24, %c0_25] : memref<1x2x1xf32, #tpu.memory_space<vmem>>, vector<1x2x1xf32>
      tpu.vector_store %arg5[%c0_23, %c0_24, %c0_25], %35 {strides = array<i32>} : memref<1x2x1xf32, #tpu.memory_space<vmem>>, vector<1x2x1xf32>,
      %cst_26 = arith.constant 0.000000e+00 : f32
      %37 = vector.broadcast %cst_26 : f32 to vector<1x2x1xf32>
      %c0_27 = arith.constant 0 : index
      %c0_28 = arith.constant 0 : index
      %c0_29 = arith.constant 0 : index
      %38 = vector.load %arg6[%c0_27, %c0_28, %c0_29] : memref<1x2x1xf32, #tpu.memory_space<vmem>>, vector<1x2x1xf32>
      tpu.vector_store %arg6[%c0_27, %c0_28, %c0_29], %37 {strides = array<i32>} : memref<1x2x1xf32, #tpu.memory_space<vmem>>, vector<1x2x1xf32>,
    } else {
    }
    %c0 = arith.constant 0 : index
    %c0_1 = arith.constant 0 : index
    %3 = vector.load %arg3[%c0, %c0_1] : memref<2x16xf32, #tpu.memory_space<vmem>>, vector<2x16xf32>
    %c0_2 = arith.constant 0 : index
    %c0_3 = arith.constant 0 : index
    %4 = vector.load %arg4[%c0_2, %c0_3] : memref<2x16xf32, #tpu.memory_space<vmem>>, vector<2x16xf32>
    %5 = arith.subf %4, %3 : vector<2x16xf32>
    %6 = math.absf %5 : vector<2x16xf32>
    %cst = arith.constant 1.000000e-03 : f32
    %7 = vector.broadcast %cst : f32 to vector<2x16xf32>
    %8 = arith.cmpf olt, %6, %7 : vector<2x16xf32>
    %cst_4 = arith.constant 5.000000e+02 : f32
    %9 = vector.broadcast %cst_4 : f32 to vector<2x16xf32>
    %10 = arith.mulf %9, %5 : vector<2x16xf32>
    %11 = arith.mulf %10, %5 : vector<2x16xf32>
    %cst_5 = arith.constant 5.000000e-04 : f32
    %12 = vector.broadcast %cst_5 : f32 to vector<2x16xf32>
    %13 = arith.subf %6, %12 : vector<2x16xf32>
    %14 = arith.select %8, %11, %13 : vector<2x16xi1>, vector<2x16xf32>
    %15 = tpu.iota {dimensions = array<i32: 1>} : vector<2x16xi32>
    %c1_i32 = arith.constant 1 : i32
    %16 = vector.broadcast %c1_i32 : i32 to vector<2x16xi32>
    %17 = arith.andi %15, %16 : vector<2x16xi32>
    %c0_i32_6 = arith.constant 0 : i32
    %18 = vector.broadcast %c0_i32_6 : i32 to vector<2x16xi32>
    %19 = arith.cmpi eq, %17, %18 : vector<2x16xi32>
    %cst_7 = arith.constant dense<0.000000e+00> : vector<2xf32>
    %20 = vector.multi_reduction <add>, %14, %cst_7 [1] : vector<2x16xf32> to vector<2xf32>
    %21 = vector.shape_cast %20 : vector<2xf32> to vector<2x1xf32>
    %cst_8 = arith.constant 0.000000e+00 : f32
    %22 = vector.broadcast %cst_8 : f32 to vector<2x16xf32>
    %23 = arith.select %19, %14, %22 : vector<2x16xi1>, vector<2x16xf32>
    %cst_9 = arith.constant dense<0.000000e+00> : vector<2xf32>
    %24 = vector.multi_reduction <add>, %23, %cst_9 [1] : vector<2x16xf32> to vector<2xf32>
    %25 = vector.shape_cast %24 : vector<2xf32> to vector<2x1xf32>
    %26 = arith.subf %21, %25 : vector<2x1xf32>
    %c0_10 = arith.constant 0 : index
    %c0_11 = arith.constant 0 : index
    %c0_12 = arith.constant 0 : index
    %27 = vector.load %arg5[%c0_10, %c0_11, %c0_12] : memref<1x2x1xf32, #tpu.memory_space<vmem>>, vector<1x2x1xf32>
    %28 = vector.shape_cast %25 : vector<2x1xf32> to vector<1x2x1xf32>
    %29 = arith.addf %27, %28 : vector<1x2x1xf32>
    %c0_13 = arith.constant 0 : index
    %c0_14 = arith.constant 0 : index
    %c0_15 = arith.constant 0 : index
    %30 = vector.load %arg5[%c0_13, %c0_14, %c0_15] : memref<1x2x1xf32, #tpu.memory_space<vmem>>, vector<1x2x1xf32>
    tpu.vector_store %arg5[%c0_13, %c0_14, %c0_15], %29 {strides = array<i32>} : memref<1x2x1xf32, #tpu.memory_space<vmem>>, vector<1x2x1xf32>,
    %c0_16 = arith.constant 0 : index
    %c0_17 = arith.constant 0 : index
    %c0_18 = arith.constant 0 : index
    %31 = vector.load %arg6[%c0_16, %c0_17, %c0_18] : memref<1x2x1xf32, #tpu.memory_space<vmem>>, vector<1x2x1xf32>
    %32 = vector.shape_cast %26 : vector<2x1xf32> to vector<1x2x1xf32>
    %33 = arith.addf %31, %32 : vector<1x2x1xf32>
    %c0_19 = arith.constant 0 : index
    %c0_20 = arith.constant 0 : index
    %c0_21 = arith.constant 0 : index
    %34 = vector.load %arg6[%c0_19, %c0_20, %c0_21] : memref<1x2x1xf32, #tpu.memory_space<vmem>>, vector<1x2x1xf32>
    tpu.vector_store %arg6[%c0_19, %c0_20, %c0_21], %33 {strides = array<i32>} : memref<1x2x1xf32, #tpu.memory_space<vmem>>, vector<1x2x1xf32>,
    return
  }
  func.func @transform_0(%arg0: i32, %arg1: i32, %arg2: i32) -> (i32, i32) {
    %c1_i32 = arith.constant 1 : i32
    %0 = arith.muli %arg1, %c1_i32 : i32
    %1 = arith.addi %0, %arg2 : i32
    %c0_i32 = arith.constant 0 : i32
    return %arg0, %1 : i32, i32
  }
  func.func @transform_1(%arg0: i32, %arg1: i32, %arg2: i32) -> (i32, i32) {
    %c1_i32 = arith.constant 1 : i32
    %0 = arith.muli %arg1, %c1_i32 : i32
    %1 = arith.addi %0, %arg2 : i32
    %c0_i32 = arith.constant 0 : i32
    return %arg0, %1 : i32, i32
  }
  func.func @transform_2(%arg0: i32, %arg1: i32, %arg2: i32) -> (i32, i32, i32) {
    %c0_i32 = arith.constant 0 : i32
    %c0_i32_0 = arith.constant 0 : i32
    return %arg1, %arg0, %c0_i32 : i32, i32, i32
  }
  func.func @transform_3(%arg0: i32, %arg1: i32, %arg2: i32) -> (i32, i32, i32) {
    %c0_i32 = arith.constant 0 : i32
    %c0_i32_0 = arith.constant 0 : i32
    return %arg1, %arg0, %c0_i32 : i32, i32, i32
  }
}

</mosaic_0001>

<llo_original>
// kernel: tpu_custom_call.1
$region0: #{tpu_custom_call.1}
  #allocation0 [shape = 'u32[]', space=smem, size = 0x4, offset = 0x4, fixed_abs, tag = 'smem constant byte address 0x4 - core index']
  #allocation1 [shape = 'u32[144,128]{1,0:T(1,128)}', space=vmem, size = 0x12000, scoped, tag = 'internal scratch']
  %s0 = inlined_call_operand.hbm [shape: f32[2,16], index: 0, kind: input, shape index: {}]
  %s1 = inlined_call_operand.vmem [shape: f32[2,16], index: 1, kind: input, shape index: {}]
  %s2 = inlined_call_operand.vmem [shape: f32[1,2,1], index: 2, kind: output, shape index: {0}]
  %s3 = inlined_call_operand.vmem [shape: f32[1,2,1], index: 3, kind: output, shape index: {1}]
  %4 = xla_tuple %s2, %s3
  %s5 = sld [smem:[#allocation0]]
  $region34: #{tpu_custom_call.1} parent=0
    _
  %s7 = ssub.s32 1, %s5
  %s8 = scalar_select 0, %s7, %s5
  $region1: #{tpu_custom_call.1} parent=0
    #allocation2 [shape = 'u8[1024]{0}', space=vmem, size = 0x400, scoped, tag = 'input window, operand 0, single buffered']
    #allocation3 [shape = 's32[1]{0}', space=sflag, size = 0x4, scoped, tag = 'scoped memory for tpu_custom_call.1']
    %9 = vsyncpa [#allocation3], 0
    // Predicated region
    $region2: #{tpu_custom_call.1} parent=1 // pred_check
      _
    $region3: #{tpu_custom_call.1} parent=1 // pred_check_branch
      %11 = sbr.rel (0) target = $region5
    $region4: #{tpu_custom_call.1} parent=1 // pred_region
      %s12 = sadd.s32 0, 0
      %s14 = ssub.s32 32, 32
      %15 = vsyncadd [#allocation3], %s14
      %s16 = smul.addr %s12, 32
      %s17 = scalar_lea.hbm %s0, %s16
      %s19 = sshll.u32 [#allocation2], 4
      %s20 = int_to_ptr.vmem [resolvable:$true] %s19
      %22 = dma.hbm_to_vmem [thread:$0]  %s17, 32, %s20, [#allocation3]
    $region5: #{tpu_custom_call.1} parent=1 // pred_fallthru
      _
    // Predicated region
    $region6: #{tpu_custom_call.1} parent=1 // pred_check
      _
    $region7: #{tpu_custom_call.1} parent=1 // pred_check_branch
      %24 = sbr.rel (0) target = $region9
    $region8: #{tpu_custom_call.1} parent=1 // pred_region
      %s25 = sadd.s32 0, 0
      %p26 = scmp.lt.s32.totalorder %s25, 0
      %s27 = scalar_select %p26, %s25, 0
      %s28 = smul.addr %s27, 2
      %s29 = scalar_lea.vmem %s1, %s28
      %s30 = sadd.s32 0, 0
    $region9: #{tpu_custom_call.1} parent=1 // pred_fallthru
      _
    // Predicated region
    $region10: #{tpu_custom_call.1} parent=1 // pred_check
      _
    $region11: #{tpu_custom_call.1} parent=1 // pred_check_branch
      %32 = sbr.rel (0) target = $region13
    $region12: #{tpu_custom_call.1} parent=1 // pred_region
      %33 = dma.done [#allocation3], 32
    $region13: #{tpu_custom_call.1} parent=1 // pred_fallthru
      _
    %s34 = sadd.s32 0, 0
    %p35 = scmp.lt.s32.totalorder %s34, 0
    %s36 = scalar_select %p35, %s34, 0
    %s37 = smul.addr %s36, 2
    %s38 = scalar_lea.vmem %s1, %s37
    %s39 = sadd.s32 0, 0
    %s40 = sadd.s32 0, 0
    %p41 = scmp.lt.s32.totalorder %s40, 0
    %s42 = scalar_select %p41, %s40, 0
    %s43 = smul.addr %s42, 2
    %s44 = scalar_lea.vmem %s1, %s43
    %s45 = sadd.s32 0, 0
    %p46 = scmp.eq.s32.totalorder 0, 0
    // Predicated region
    $region14: #{tpu_custom_call.1} parent=1 // pred_check
      %p47 = pneg %p46
    $region15: #{tpu_custom_call.1} parent=1 // pred_check_branch
      %49 = sbr.rel (%p47) target = $region17
    $region16: #{tpu_custom_call.1} parent=1 // pred_region
      %vm50 = vcmask 1024
      %51 = vst.msk [vmem:[%s2] sm:$0x3] %vm50, 0.0
      %52 = vst.msk [vmem:[%s3] sm:$0x3] %vm50, 0.0
    $region17: #{tpu_custom_call.1} parent=1 // pred_fallthru
      _
    %v53 = vld [vmem:[#allocation2] sm:$0x3]
    %v54 = vld [vmem:[%s44] sm:$0x3]
    %v55 = vsub.f32 %v54, %v53
    %v56 = vand.u32 2147483647, %v55
    %vm57 = vcmp.lt.f32.partialorder %v56, 0.001
    %v58 = vmul.f32 %v55, 500.0
    %v59 = vmul.f32 %v58, %v55
    %v60 = vsub.f32 %v56, 0.0005
    %v61 = vsel %vm57, %v59, %v60
    %v62 = vlaneseq
    %v63 = vand.u32 %v62, 127
    %v64 = vand.u32 %v63, 1
    %vm65 = vcmp.eq.s32.totalorder %v64, 0
    %vm66 = vcmask 123904
    %v67 = vsel %vm66, %v61, 0.0
    %68 = vadd.xlane.f32.xlu0 %v67
    %v69 = vpop.xlane.xlu0 %68
    %v70 = vsel %vm65, %v61, 0.0
    %v71 = vsel %vm66, %v70, 0.0
    %72 = vadd.xlane.f32.xlu0 %v71
    %v73 = vpop.xlane.xlu0 %72
    %v74 = vsub.f32 %v69, %v73
    %v75 = vld [vmem:[%s2] sm:$0x3]
    %v76 = vadd.f32 %v75, %v73
    %vm77 = vcmask 1024
    %78 = vst.msk [vmem:[%s2] sm:$0x3] %vm77, %v76
    %v79 = vld [vmem:[%s3] sm:$0x3]
    %v80 = vadd.f32 %v79, %v74
    %81 = vst.msk [vmem:[%s3] sm:$0x3] %vm77, %v80
    // Predicated region
    $region18: #{tpu_custom_call.1} parent=1 // pred_check
      _
    $region19: #{tpu_custom_call.1} parent=1 // pred_check_branch
      %83 = sbr.rel (0) target = $region21
    $region20: #{tpu_custom_call.1} parent=1 // pred_region
      _
    $region21: #{tpu_custom_call.1} parent=1 // pred_fallthru
      _
    // Predicated region
    $region22: #{tpu_custom_call.1} parent=1 // pred_check
      _
    $region23: #{tpu_custom_call.1} parent=1 // pred_check_branch
      %85 = sbr.rel (0) target = $region25
    $region24: #{tpu_custom_call.1} parent=1 // pred_region
      _
    $region25: #{tpu_custom_call.1} parent=1 // pred_fallthru
      _
    // Predicated region
    $region26: #{tpu_custom_call.1} parent=1 // pred_check
      _
    $region27: #{tpu_custom_call.1} parent=1 // pred_check_branch
      %87 = sbr.rel (0) target = $region29
    $region28: #{tpu_custom_call.1} parent=1 // pred_region
      _
    $region29: #{tpu_custom_call.1} parent=1 // pred_fallthru
      _
    // Predicated region
    $region30: #{tpu_custom_call.1} parent=1 // pred_check
      _
    $region31: #{tpu_custom_call.1} parent=1 // pred_check_branch
      %89 = sbr.rel (0) target = $region33
    $region32: #{tpu_custom_call.1} parent=1 // pred_region
      _
    $region33: #{tpu_custom_call.1} parent=1 // pred_fallthru
      _
    %90 = vsyncpa [#allocation3], 1

</llo_original>
